<compile_context>
chip_gen: v6e
topology: v6e:2x2x1
jax: 0.10.0
libtpu: 0.0.40
codegen_flags: <defaults>
</compile_context>

<pallas_src>
import functools

import jax
import jax.numpy as jnp
from jax.experimental import pallas as pl
from jax.experimental.pallas import tpu as pltpu


def _round_down(x, m):
    return (x // m) * m


def gdn_scores_kernel(w_ref, e_ref, o_ref):
    # w_ref: (C, D)   VMEM, resident across the grid (constant block index)
    # e_ref: (D, tn)  VMEM, streamed node tile (nodes on the lane axis, lane-dense)
    # o_ref: (C, tn)  VMEM, lane-dense output tile
    # out = weight @ embeds1  (K = embed_dim contracted in MXU-native form)
    o_ref[...] = jnp.dot(
        w_ref[...], e_ref[...], preferred_element_type=jnp.float32
    ).astype(o_ref.dtype)


@functools.partial(jax.jit, static_argnames=("target_tile_bytes",))
def gdn_layer_forward(weight, embeds1, *, target_tile_bytes=4 * 1024 * 1024):
    """GDNLayer.forward hot path: (weight.mm(embeds1)).t().

    weight : (num_classes, embed_dim)  f32 (or bf16)
    embeds1: (embed_dim, num_nodes)    f32 (or bf16)  -- output of inter1(nodes, labels)
    returns: (num_nodes, num_classes)  f32
    """
    num_classes, embed_dim = weight.shape
    embed_dim2, num_nodes = embeds1.shape
    assert embed_dim == embed_dim2

    e_itemsize = jnp.dtype(embeds1.dtype).itemsize
    w_itemsize = jnp.dtype(weight.dtype).itemsize
    out_dtype = jnp.float32
    out_itemsize = jnp.dtype(out_dtype).itemsize

    # Node tile: ~target_tile_bytes of embeds1 per grid step, lane-dense (multiple
    # of 128).  For embed_dim=32 f32 this gives tn=32768 (~4 MiB/tile).
    bytes_per_node_col = embed_dim * e_itemsize
    tn = max(128, _round_down(target_tile_bytes // bytes_per_node_col, 128))
    if num_nodes <= tn:
        # Single block covering the full node extent.  Legal layout even when
        # num_nodes is not a multiple of 128 (block dim == full array dim), and it
        # avoids any padding or copies for small inputs.
        tn = num_nodes
    grid = (pl.cdiv(num_nodes, tn),)

    # Actual double-buffered VMEM footprint (BlockSpec pipeline depth = 2),
    # with headroom; capped at 48 MiB so it fits v7x's 64 MiB VMEM per TC.
    footprint = (
        2 * tn * embed_dim * e_itemsize          # streamed embeds1 tiles
        + 2 * tn * num_classes * out_itemsize    # output tiles
        + 2 * num_classes * embed_dim * w_itemsize
    )
    vmem_limit = int(min(48 * 1024 * 1024, max(16 * 1024 * 1024, 2 * footprint)))

    scores_cn = pl.pallas_call(
        gdn_scores_kernel,
        out_shape=jax.ShapeDtypeStruct((num_classes, num_nodes), out_dtype),
        grid=grid,
        in_specs=[
            # Weight stays fully VMEM-resident (same block every step).
            pl.BlockSpec((num_classes, embed_dim), lambda i: (0, 0)),
            # Stream embeds1 node tiles straight from HBM (no padded copy);
            # a ragged last block is handled by Pallas (masked writeback).
            pl.BlockSpec((embed_dim, tn), lambda i: (0, i)),
        ],
        out_specs=pl.BlockSpec((num_classes, tn), lambda i: (0, i)),
        compiler_params=pltpu.CompilerParams(
            # Node axis is reduction-free -> parallel.
            dimension_semantics=("parallel",),
            vmem_limit_bytes=vmem_limit,
        ),
    )(weight, embeds1)

    # PyTorch semantics: scores.t() -> (num_nodes, num_classes).  No slicing is
    # needed because the kernel output is already exactly (num_classes, num_nodes).
    return scores_cn.T


def xavier_uniform(key, shape, dtype=jnp.float32):
    # Matches torch.nn.init.xavier_uniform_ for a 2D (fan_out, fan_in) weight.
    fan_out, fan_in = shape
    bound = jnp.sqrt(6.0 / (fan_in + fan_out))
    return jax.random.uniform(key, shape, dtype=dtype, minval=-bound, maxval=bound)


def reference_forward(weight, embeds1):
    # Pure-JAX reference of the PyTorch semantics: (weight @ embeds1).T
    return (weight @ embeds1).T


if __name__ == "__main__":
    num_classes = 2
    embed_dim = 32
    num_nodes = 8  # "nodes" batch

    key = jax.random.PRNGKey(0)
    k_w, k_e = jax.random.split(key)

    # Parameter: self.weight, xavier-uniform initialized (num_classes, embed_dim).
    weight = xavier_uniform(k_w, (num_classes, embed_dim))

    # Stand-in for inter1(nodes, labels): (embed_dim, num_nodes) embedding matrix.
    embeds1 = jax.random.normal(k_e, (embed_dim, num_nodes), dtype=jnp.float32)

    out = gdn_layer_forward(weight, embeds1)
    out = jax.block_until_ready(out)

    ref = reference_forward(weight, embeds1)
    assert out.shape == (num_nodes, num_classes), out.shape
    assert jnp.allclose(out, ref, atol=1e-5, rtol=1e-5), "mismatch vs reference"

    print("KERNEL_OK")
</pallas_src>

<mosaic_0001>
module attributes {stable_mosaic.version = 11 : i64} {
  func.func @gdn_scores_kernel(%arg0: i32, %arg1: memref<2x32xf32, #tpu.memory_space<vmem>>, %arg2: memref<32x8xf32, #tpu.memory_space<vmem>>, %arg3: memref<2x8xf32, #tpu.memory_space<vmem>>) attributes {dimension_semantics = [#tpu.dimension_semantics<parallel>], iteration_bounds = array<i64: 1>, scalar_prefetch = 0 : i64, scratch_operands = 0 : i64, tpu.core_type = #tpu.core_type<tc>, window_params = [{pipeline_mode = #tpu.pipeline_mode<synchronous>, transform_indices = @transform_0, window_bounds = array<i64: 2, 32>}, {transform_indices = @transform_1, window_bounds = array<i64: 32, 8>}, {transform_indices = @transform_2, window_bounds = array<i64: 2, 8>}]} {
    %c0 = arith.constant 0 : index
    %c0_0 = arith.constant 0 : index
    %0 = vector.load %arg1[%c0, %c0_0] : memref<2x32xf32, #tpu.memory_space<vmem>>, vector<2x32xf32>
    %c0_1 = arith.constant 0 : index
    %c0_2 = arith.constant 0 : index
    %1 = vector.load %arg2[%c0_1, %c0_2] : memref<32x8xf32, #tpu.memory_space<vmem>>, vector<32x8xf32>
    %cst = arith.constant dense<0.000000e+00> : vector<2x8xf32>
    %2 = tpu.matmul %0, %1, %cst {dimension_numbers = #tpu.dot_dimension_numbers<[1], [0], [0], [1], [0, 0, 1, 1], [], []>} : vector<2x32xf32>, vector<32x8xf32>, vector<2x8xf32> -> vector<2x8xf32>
    %c0_3 = arith.constant 0 : index
    %c0_4 = arith.constant 0 : index
    %3 = vector.load %arg3[%c0_3, %c0_4] : memref<2x8xf32, #tpu.memory_space<vmem>>, vector<2x8xf32>
    tpu.vector_store %arg3[%c0_3, %c0_4], %2 {strides = array<i32>} : memref<2x8xf32, #tpu.memory_space<vmem>>, vector<2x8xf32>,
    return
  }
  func.func @transform_0(%arg0: i32) -> (i32, i32) {
    %c0_i32 = arith.constant 0 : i32
    %c0_i32_0 = arith.constant 0 : i32
    %c0_i32_1 = arith.constant 0 : i32
    return %c0_i32, %c0_i32_0 : i32, i32
  }
  func.func @transform_1(%arg0: i32) -> (i32, i32) {
    %c0_i32 = arith.constant 0 : i32
    %c0_i32_0 = arith.constant 0 : i32
    return %c0_i32, %arg0 : i32, i32
  }
  func.func @transform_2(%arg0: i32) -> (i32, i32) {
    %c0_i32 = arith.constant 0 : i32
    %c0_i32_0 = arith.constant 0 : i32
    return %c0_i32, %arg0 : i32, i32
  }
}

</mosaic_0001>

<llo_original>
// kernel: gdn_layer_forward.1
$region0: #{gdn_layer_forward.1}
  #allocation0 [shape = 'u32[]', space=smem, size = 0x4, offset = 0x4, fixed_abs, tag = 'smem constant byte address 0x4 - core index']
  #allocation1 [shape = 'u32[144,128]{1,0:T(1,128)}', space=vmem, size = 0x12000, scoped, tag = 'internal scratch']
  %s0 = inlined_call_operand.vmem [shape: f32[2,32], index: 0, kind: input, shape index: {}]
  %s1 = inlined_call_operand.vmem [shape: f32[32,8], index: 1, kind: input, shape index: {}]
  %s2 = inlined_call_operand.hbm [shape: f32[2,8], index: 2, kind: output, shape index: {}]
  %s3 = sld [smem:[#allocation0]]
  $region18: #{gdn_layer_forward.1} parent=0
    _
  %s5 = ssub.s32 1, %s3
  %s6 = scalar_select 0, %s5, %s3
  $region1: #{gdn_layer_forward.1} parent=0
    #allocation2 [shape = 'u8[1024]{0}', space=vmem, size = 0x400, scoped, tag = 'output window, operand 0, single buffered']
    #allocation3 [shape = 's32[1]{0}', space=sflag, size = 0x4, scoped, tag = 'scoped memory for gdn_layer_forward.1']
    %7 = vsyncpa [#allocation3], 0
    // Predicated region
    $region2: #{gdn_layer_forward.1} parent=1 // pred_check
      _
    $region3: #{gdn_layer_forward.1} parent=1 // pred_check_branch
      %9 = sbr.rel (0) target = $region5
    $region4: #{gdn_layer_forward.1} parent=1 // pred_region
      _
    $region5: #{gdn_layer_forward.1} parent=1 // pred_fallthru
      _
    // Predicated region
    $region6: #{gdn_layer_forward.1} parent=1 // pred_check
      _
    $region7: #{gdn_layer_forward.1} parent=1 // pred_check_branch
      %11 = sbr.rel (0) target = $region9
    $region8: #{gdn_layer_forward.1} parent=1 // pred_region
      _
    $region9: #{gdn_layer_forward.1} parent=1 // pred_fallthru
      _
    %v12 = vld [vmem:[%s0] sm:$0x3]
    %v13 = vld [vmem:[%s1] sm:$0xff]
    %v14 = vld [vmem:[%s1 + $0x8] sm:$0xff]
    %v15 = vld [vmem:[%s1 + $0x10] sm:$0xff]
    %v16 = vld [vmem:[%s1 + $0x18] sm:$0xff]
    %vm17 = vcmask 261120
    %v19 = vsel %vm17, %v12, 0
    %21 = vmatprep.subr.mxu0 0.0
    %22 = vmatpush1.msra.mxu0 0.0
    %23 = vmatprep.subr.mxu0 0.0
    %24 = vmatpush1.msra.mxu0 0.0
    %25 = vmatprep.subr.mxu0 0.0
    %26 = vmatpush1.msra.mxu0 0.0
    %27 = vmatprep.subr.mxu0 0.0
    %28 = vmatpush1.msra.mxu0 0.0
    %29 = vmatprep.subr.mxu0 0.0
    %30 = vmatpush1.msra.mxu0 0.0
    %31 = vmatprep.subr.mxu0 0.0
    %32 = vmatpush1.msra.mxu0 0.0
    %33 = vmatprep.subr.mxu0 0.0
    %34 = vmatpush1.msra.mxu0 0.0
    %35 = vmatprep.subr.mxu0 0.0
    %36 = vmatpush1.msra.mxu0 0.0
    %37 = vmatprep.subr.mxu0 0.0
    %38 = vmatpush1.msra.mxu0 0.0
    %39 = vmatprep.subr.mxu0 0.0
    %40 = vmatpush1.msra.mxu0 0.0
    %41 = vmatprep.subr.mxu0 0.0
    %42 = vmatpush1.msra.mxu0 0.0
    %43 = vmatprep.subr.mxu0 0.0
    %44 = vmatpush1.msra.mxu0 0.0
    %45 = vmatprep.subr.mxu0 0.0
    %46 = vmatpush1.msra.mxu0 %v16
    %47 = vmatprep.subr.mxu0 0.0
    %48 = vmatpush1.msra.mxu0 %v15
    %49 = vmatprep.subr.mxu0 0.0
    %50 = vmatpush1.msra.mxu0 %v14
    %51 = vmatprep.subr.mxu0 0.0
    %52 = vmatpush1.msra.mxu0 %v13
    %53 = vmatprep.subr.mxu0 0.0
    %54 = vmatpush2.msra.mxu0 0.0
    %55 = vmatprep.subr.mxu0 0.0
    %56 = vmatpush2.msra.mxu0 0.0
    %57 = vmatprep.subr.mxu0 0.0
    %58 = vmatpush2.msra.mxu0 0.0
    %59 = vmatprep.subr.mxu0 0.0
    %60 = vmatpush2.msra.mxu0 0.0
    %61 = vmatprep.subr.mxu0 0.0
    %62 = vmatpush2.msra.mxu0 0.0
    %63 = vmatprep.subr.mxu0 0.0
    %64 = vmatpush2.msra.mxu0 0.0
    %65 = vmatprep.subr.mxu0 0.0
    %66 = vmatpush2.msra.mxu0 0.0
    %67 = vmatprep.subr.mxu0 0.0
    %68 = vmatpush2.msra.mxu0 0.0
    %69 = vmatprep.subr.mxu0 0.0
    %70 = vmatpush2.msra.mxu0 0.0
    %71 = vmatprep.subr.mxu0 0.0
    %72 = vmatpush2.msra.mxu0 0.0
    %73 = vmatprep.subr.mxu0 0.0
    %74 = vmatpush2.msra.mxu0 0.0
    %75 = vmatprep.subr.mxu0 0.0
    %76 = vmatpush2.msra.mxu0 0.0
    %77 = vmatprep.subr.mxu0 0.0
    %78 = vmatpush2.msra.mxu0 0.0
    %79 = vmatprep.subr.mxu0 0.0
    %80 = vmatpush2.msra.mxu0 0.0
    %81 = vmatprep.subr.mxu0 0.0
    %82 = vmatpush2.msra.mxu0 0.0
    %83 = vmatprep.subr.mxu0 0.0
    %84 = vmatpush2.msra.mxu0 0.0
    %85 = vmatprep.mubr.f32.mxu0 0.0
    %86 = vmatmul.mubr.f32.gmra.mxu0 %v19
    %v87 = vpop.f32.mrf.mxu0
    %v88 = vadd.f32 0.0, %v87
    %v89 = vpop.f32.mrf.mxu0
    %90 = vdwg.mxu0
    %vm91 = vcmask 58368
    %92 = vst.msk [vmem:[#allocation2] sm:$0x3] %vm91, %v88
    // Predicated region
    $region10: #{gdn_layer_forward.1} parent=1 // pred_check
      _
    $region11: #{gdn_layer_forward.1} parent=1 // pred_check_branch
      %94 = sbr.rel (0) target = $region13
    $region12: #{gdn_layer_forward.1} parent=1 // pred_region
      %s96 = ssub.s32 32, 32
      %97 = vsyncadd [#allocation3], %s96
      %s99 = sshll.u32 [#allocation2], 4
      %s100 = int_to_ptr.vmem [resolvable:$true] %s99
      %102 = dma.vmem_to_hbm [thread:$0]  %s100, 32, %s2, [#allocation3]
    $region13: #{gdn_layer_forward.1} parent=1 // pred_fallthru
      _
    // Predicated region
    $region14: #{gdn_layer_forward.1} parent=1 // pred_check
      _
    $region15: #{gdn_layer_forward.1} parent=1 // pred_check_branch
      %104 = sbr.rel (0) target = $region17
    $region16: #{gdn_layer_forward.1} parent=1 // pred_region
      %105 = dma.done [#allocation3], 32
    $region17: #{gdn_layer_forward.1} parent=1 // pred_fallthru
      _
    %106 = vsyncpa [#allocation3], 1

</llo_original>
